<compile_context>
chip_gen: v5e
topology: v5e:2x2
jax: 0.10.0
libtpu: 0.0.40
codegen_flags: <defaults>
</compile_context>

<pallas_src>
import functools

import jax
import jax.numpy as jnp
from jax.experimental import pallas as pl
from jax.experimental.pallas import tpu as pltpu


def _round_up(x: int, m: int) -> int:
    return (x + m - 1) // m * m


# VMEM budget for the double-buffered (ids, out) pipeline blocks.  Kept well
# under v5e's 16 MiB default scoped VMEM and v7x's 64 MiB physical VMEM.
_PIPELINE_VMEM_BUDGET = 8 * 1024 * 1024
# Hard cap on the VMEM-resident (double-buffered) packed table.
_TABLE_VMEM_LIMIT = 12 * 1024 * 1024
_VMEM_LIMIT_BYTES = 32 * 1024 * 1024


def _packed_onehot_gather_kernel(ids_ref, table_ref, out_ref, *, pack, vocab_pad):
    # ids_ref   : VMEM (rows_blk, pack) int32        -- pack ids per packed output row
    # table_ref : VMEM (pack*vocab_pad, pack*emb)    -- block-diagonal replicated table
    # out_ref   : VMEM (rows_blk, pack*emb)          -- 128-lane-dense gathered rows
    ids = ids_ref[...]                                # (rows, pack) int32
    rows = ids.shape[0]
    K = table_ref.shape[0]                            # pack * vocab_pad
    # Map OOR / garbage ids (incl. ragged-tail padding) to sentinel K: it can
    # never match any column (cols < K), so those positions gather zero rows
    # and cannot alias another pack group.
    ids = jnp.where((ids >= 0) & (ids < vocab_pad), ids, K)
    cols = jax.lax.broadcasted_iota(jnp.int32, (rows, K), 1)
    onehot = jnp.zeros((rows, K), dtype=table_ref.dtype)
    for g in range(pack):                             # pack <= 4, unrolled at trace time
        onehot = onehot + (cols == (ids[:, g:g + 1] + g * vocab_pad)).astype(table_ref.dtype)
    out_ref[...] = jnp.dot(
        onehot, table_ref[...], preferred_element_type=jnp.float32
    ).astype(out_ref.dtype)


def _pack_table(table: jax.Array):
    """Build the block-diagonal replicated table.

    Returns (packed_table (pack*vocab_pad, pack*emb), pack, vocab_pad).
    """
    vocab, emb = int(table.shape[0]), int(table.shape[1])
    pack = (128 // emb) if (emb < 128 and 128 % emb == 0) else 1
    vocab_pad = _round_up(vocab, 8)  # zero pad rows, never selected
    base = jnp.zeros((vocab_pad, emb), table.dtype).at[:vocab].set(table)
    if pack == 1:
        return base, 1, vocab_pad
    packed = jnp.zeros((pack * vocab_pad, pack * emb), table.dtype)
    for g in range(pack):
        packed = packed.at[g * vocab_pad:(g + 1) * vocab_pad,
                           g * emb:(g + 1) * emb].set(base)
    return packed, pack, vocab_pad


@functools.partial(jax.jit,
                   static_argnames=("pack", "vocab_pad", "emb", "max_rows_per_step"))
def packed_embedding_lookup(packed, ids, *, pack, vocab_pad, emb,
                            max_rows_per_step=None):
    """Gather `table[ids]` using the packed one-hot MXU kernel.

    packed : (pack*vocab_pad, pack*emb) block-diagonal table from _pack_table.
    ids    : (seq,) int32; out-of-range ids yield zero rows.
    returns (seq, emb) in the table dtype.
    """
    seq = int(ids.shape[0])
    if seq == 0:
        return jnp.zeros((0, emb), packed.dtype)
    ids = jnp.asarray(ids, jnp.int32)

    K, N = int(packed.shape[0]), int(packed.shape[1])   # K = pack*vocab_pad, N = pack*emb
    table_vmem = 2 * K * max(N, 128) * 4
    if table_vmem > _TABLE_VMEM_LIMIT:
        # TODO(synk): for large vocabularies switch to a scalar-prefetch
        # (PrefetchScalarGridSpec num_scalar_prefetch=1) row-gather with
        # pl.Element on the vocab dim instead of a VMEM-resident one-hot table.
        raise NotImplementedError(
            "vocabulary too large for the VMEM-resident one-hot gather")

    # Pad ids only to a multiple of `pack` (<= pack-1 rows); padded rows are
    # trimmed after the byte-exact reshape (no-op when seq % pack == 0).
    seq_p = _round_up(seq, pack)
    if seq_p != seq:
        ids = jnp.pad(ids, (0, seq_p - seq))
    rows_total = seq_p // pack
    ids2d = ids.reshape(rows_total, pack)               # pack-major ids layout

    # Block size from the VMEM budget (double-buffered out block + lane-padded
    # ids block). At emb=32 this gives ~4096 packed rows (16384 original rows).
    bytes_per_row = 2 * (N * 4 + 128 * 4)
    budget_rows = max(8, (_PIPELINE_VMEM_BUDGET // bytes_per_row) // 8 * 8)
    if max_rows_per_step is not None:
        budget_rows = max(8, min(budget_rows, (max_rows_per_step // 8) * 8))
    if budget_rows >= rows_total:
        rows_blk = rows_total        # single step; full-extent blocks are always legal
    else:
        rows_blk = budget_rows       # multiple of 8; ragged last block handled by Pallas
    grid = (pl.cdiv(rows_total, rows_blk),)

    kernel = functools.partial(_packed_onehot_gather_kernel,
                               pack=pack, vocab_pad=vocab_pad)
    out = pl.pallas_call(
        kernel,
        out_shape=jax.ShapeDtypeStruct((rows_total, N), packed.dtype),
        grid_spec=pltpu.PrefetchScalarGridSpec(
            num_scalar_prefetch=0,
            grid=grid,
            in_specs=[
                pl.BlockSpec((rows_blk, pack), lambda i: (i, 0)),   # ids block
                pl.BlockSpec((K, N), lambda i: (0, 0)),             # resident table
            ],
            out_specs=pl.BlockSpec((rows_blk, N), lambda i: (i, 0)),
        ),
        compiler_params=pltpu.CompilerParams(
            dimension_semantics=("parallel",),
            vmem_limit_bytes=_VMEM_LIMIT_BYTES,
        ),
    )(ids2d, packed)

    # Row-major byte reinterpretation: (rows_total, pack*emb) == (seq_p, emb).
    out = out.reshape(seq_p, emb)
    if seq_p != seq:
        out = out[:seq]
    return out


def embedding_lookup(table, ids, *, max_rows_per_step=None):
    """Gather rows `table[ids]` (builds the packed table on the fly)."""
    packed, pack, vocab_pad = _pack_table(table)
    return packed_embedding_lookup(packed, ids, pack=pack, vocab_pad=vocab_pad,
                                   emb=int(table.shape[1]),
                                   max_rows_per_step=max_rows_per_step)


class Embedding:
    """JAX/Pallas port of the PyTorch Embedding module (forward only)."""
    # TODO(synk): training (gradient w.r.t. the table) would need a custom_vjp
    # (backward = onehot^T @ g scatter-add); this port is inference-only.

    def __init__(self, alphabet: set, emb_size: int, key=None):
        self.emb_size = emb_size
        self.obj_to_ix = {}
        for ix, obj in enumerate(sorted(alphabet, key=repr)):   # deterministic order
            self.obj_to_ix[obj] = ix
        self.padding_idx = len(self.obj_to_ix)
        self.vocab = self.padding_idx + 1                        # incl. padding row

        if key is None:
            key = jax.random.PRNGKey(0)
        # nn.Embedding default init: N(0, 1); padding_idx row zeroed.
        table = jax.random.normal(key, (self.vocab, emb_size), dtype=jnp.float32)
        self.table = table.at[self.padding_idx].set(0.0)
        # Precompute the packed block-diagonal table once (tiny).
        self._packed, self._pack, self._vocab_pad = _pack_table(self.table)

    def embedding_size(self) -> int:
        return self.emb_size

    def _sym_to_ix(self, sym) -> int:
        try:
            return self.obj_to_ix[sym]
        except KeyError:
            return self.padding_idx

    def forward(self, sym) -> jax.Array:
        """Embed a single symbol -> (emb_size,). Plain row read (a seq=1
        pallas_call is pure dispatch overhead for a 128-byte copy)."""
        return self.table[self._sym_to_ix(sym)]

    def forwards(self, syms) -> jax.Array:
        """Embed a sequence of symbols -> (len(syms), emb_size)."""
        ixs = jnp.array([self._sym_to_ix(s) for s in syms], dtype=jnp.int32)
        return packed_embedding_lookup(self._packed, ixs, pack=self._pack,
                                       vocab_pad=self._vocab_pad, emb=self.emb_size)


if __name__ == "__main__":
    alphabet = set("abcdefgh")          # 8 symbols -> vocab = 9 (incl. padding row)
    emb_size = 32                       # pack = 4 -> 128-lane-dense output rows
    module = Embedding(alphabet, emb_size, key=jax.random.PRNGKey(0))

    # 1) Word with an unknown symbol; seq=8 is a multiple of pack -> no trim.
    word = ["a", "b", "c", "z", "h", "g", "a", "d"]
    out_seq = module.forwards(word)
    out_one = module.forward("c")
    jax.block_until_ready(out_seq)
    jax.block_until_ready(out_one)
    ixs = jnp.array([module._sym_to_ix(s) for s in word], dtype=jnp.int32)
    ref = module.table[ixs]
    assert out_seq.shape == (len(word), emb_size)
    assert out_one.shape == (emb_size,)
    assert jnp.allclose(out_seq, ref)
    assert jnp.allclose(out_seq[3], jnp.zeros((emb_size,)))   # unknown -> zero row
    assert jnp.allclose(out_one, module.table[module.obj_to_ix["c"]])

    # 2) seq=1000: single grid step (full-extent block), no padding, no trim.
    ids_long = jax.random.randint(jax.random.PRNGKey(1), (1000,), 0, module.vocab,
                                  dtype=jnp.int32)
    out_long = embedding_lookup(module.table, ids_long)
    jax.block_until_ready(out_long)
    assert out_long.shape == (1000, emb_size)
    assert jnp.allclose(out_long, module.table[ids_long])

    # 3) Forced multi-step grid with a ragged last block.
    out_multi = embedding_lookup(module.table, ids_long, max_rows_per_step=64)
    jax.block_until_ready(out_multi)
    assert jnp.allclose(out_multi, module.table[ids_long])

    # 4) seq not a multiple of the packing factor (pad + trim path).
    ids_odd = ids_long[:13]
    out_odd = embedding_lookup(module.table, ids_odd)
    jax.block_until_ready(out_odd)
    assert out_odd.shape == (13, emb_size)
    assert jnp.allclose(out_odd, module.table[ids_odd])

    print("KERNEL_OK")
</pallas_src>

<mosaic_0001>
module attributes {stable_mosaic.version = 11 : i64} {
  func.func @_packed_onehot_gather_kernel(%arg0: i32, %arg1: memref<2x4xi32, #tpu.memory_space<vmem>>, %arg2: memref<64x128xf32, #tpu.memory_space<vmem>>, %arg3: memref<2x128xf32, #tpu.memory_space<vmem>>) attributes {dimension_semantics = [#tpu.dimension_semantics<parallel>], iteration_bounds = array<i64: 1>, scalar_prefetch = 0 : i64, scratch_operands = 0 : i64, tpu.core_type = #tpu.core_type<tc>, window_params = [{transform_indices = @transform_0, window_bounds = array<i64: 2, 4>}, {pipeline_mode = #tpu.pipeline_mode<synchronous>, transform_indices = @transform_1, window_bounds = array<i64: 64, 128>}, {transform_indices = @transform_2, window_bounds = array<i64: 2, 128>}]} {
    %c0 = arith.constant 0 : index
    %c0_0 = arith.constant 0 : index
    %0 = vector.load %arg1[%c0, %c0_0] : memref<2x4xi32, #tpu.memory_space<vmem>>, vector<2x4xi32>
    %c0_i32 = arith.constant 0 : i32
    %1 = vector.broadcast %c0_i32 : i32 to vector<2x4xi32>
    %2 = arith.cmpi sge, %0, %1 : vector<2x4xi32>
    %c16_i32 = arith.constant 16 : i32
    %3 = vector.broadcast %c16_i32 : i32 to vector<2x4xi32>
    %4 = arith.cmpi slt, %0, %3 : vector<2x4xi32>
    %5 = arith.andi %2, %4 : vector<2x4xi1>
    %c64_i32 = arith.constant 64 : i32
    %6 = vector.broadcast %c64_i32 : i32 to vector<2x4xi32>
    %7 = arith.select %5, %0, %6 : vector<2x4xi1>, vector<2x4xi32>
    %8 = tpu.iota {dimensions = array<i32: 1>} : vector<2x64xi32>
    %cst = arith.constant 0.000000e+00 : f32
    %9 = vector.broadcast %cst : f32 to vector<2x64xf32>
    %10 = vector.extract_strided_slice %7 {offsets = [0, 0], sizes = [2, 1], strides = [1, 1]} : vector<2x4xi32> to vector<2x1xi32>
    %c0_i32_1 = arith.constant 0 : i32
    %11 = vector.broadcast %c0_i32_1 : i32 to vector<2x1xi32>
    %12 = arith.addi %10, %11 : vector<2x1xi32>
    %13 = vector.broadcast %12 : vector<2x1xi32> to vector<2x64xi32>
    %14 = arith.cmpi eq, %8, %13 : vector<2x64xi32>
    %15 = arith.extui %14 : vector<2x64xi1> to vector<2x64xi32>
    %16 = arith.sitofp %15 : vector<2x64xi32> to vector<2x64xf32>
    %17 = arith.addf %9, %16 : vector<2x64xf32>
    %18 = vector.extract_strided_slice %7 {offsets = [0, 1], sizes = [2, 1], strides = [1, 1]} : vector<2x4xi32> to vector<2x1xi32>
    %c16_i32_2 = arith.constant 16 : i32
    %19 = vector.broadcast %c16_i32_2 : i32 to vector<2x1xi32>
    %20 = arith.addi %18, %19 : vector<2x1xi32>
    %21 = vector.broadcast %20 : vector<2x1xi32> to vector<2x64xi32>
    %22 = arith.cmpi eq, %8, %21 : vector<2x64xi32>
    %23 = arith.extui %22 : vector<2x64xi1> to vector<2x64xi32>
    %24 = arith.sitofp %23 : vector<2x64xi32> to vector<2x64xf32>
    %25 = arith.addf %17, %24 : vector<2x64xf32>
    %26 = vector.extract_strided_slice %7 {offsets = [0, 2], sizes = [2, 1], strides = [1, 1]} : vector<2x4xi32> to vector<2x1xi32>
    %c32_i32 = arith.constant 32 : i32
    %27 = vector.broadcast %c32_i32 : i32 to vector<2x1xi32>
    %28 = arith.addi %26, %27 : vector<2x1xi32>
    %29 = vector.broadcast %28 : vector<2x1xi32> to vector<2x64xi32>
    %30 = arith.cmpi eq, %8, %29 : vector<2x64xi32>
    %31 = arith.extui %30 : vector<2x64xi1> to vector<2x64xi32>
    %32 = arith.sitofp %31 : vector<2x64xi32> to vector<2x64xf32>
    %33 = arith.addf %25, %32 : vector<2x64xf32>
    %34 = vector.extract_strided_slice %7 {offsets = [0, 3], sizes = [2, 1], strides = [1, 1]} : vector<2x4xi32> to vector<2x1xi32>
    %c48_i32 = arith.constant 48 : i32
    %35 = vector.broadcast %c48_i32 : i32 to vector<2x1xi32>
    %36 = arith.addi %34, %35 : vector<2x1xi32>
    %37 = vector.broadcast %36 : vector<2x1xi32> to vector<2x64xi32>
    %38 = arith.cmpi eq, %8, %37 : vector<2x64xi32>
    %39 = arith.extui %38 : vector<2x64xi1> to vector<2x64xi32>
    %40 = arith.sitofp %39 : vector<2x64xi32> to vector<2x64xf32>
    %41 = arith.addf %33, %40 : vector<2x64xf32>
    %c0_3 = arith.constant 0 : index
    %c0_4 = arith.constant 0 : index
    %42 = vector.load %arg2[%c0_3, %c0_4] : memref<64x128xf32, #tpu.memory_space<vmem>>, vector<64x128xf32>
    %cst_5 = arith.constant dense<0.000000e+00> : vector<2x128xf32>
    %43 = tpu.matmul %41, %42, %cst_5 {dimension_numbers = #tpu.dot_dimension_numbers<[1], [0], [0], [1], [0, 0, 1, 1], [], []>} : vector<2x64xf32>, vector<64x128xf32>, vector<2x128xf32> -> vector<2x128xf32>
    %c0_6 = arith.constant 0 : index
    %c0_7 = arith.constant 0 : index
    %44 = vector.load %arg3[%c0_6, %c0_7] : memref<2x128xf32, #tpu.memory_space<vmem>>, vector<2x128xf32>
    tpu.vector_store %arg3[%c0_6, %c0_7], %43 {strides = array<i32>} : memref<2x128xf32, #tpu.memory_space<vmem>>, vector<2x128xf32>,
    return
  }
  func.func @transform_0(%arg0: i32) -> (i32, i32) {
    %c0_i32 = arith.constant 0 : i32
    %c0_i32_0 = arith.constant 0 : i32
    return %arg0, %c0_i32 : i32, i32
  }
  func.func @transform_1(%arg0: i32) -> (i32, i32) {
    %c0_i32 = arith.constant 0 : i32
    %c0_i32_0 = arith.constant 0 : i32
    %c0_i32_1 = arith.constant 0 : i32
    return %c0_i32, %c0_i32_0 : i32, i32
  }
  func.func @transform_2(%arg0: i32) -> (i32, i32) {
    %c0_i32 = arith.constant 0 : i32
    %c0_i32_0 = arith.constant 0 : i32
    return %arg0, %c0_i32 : i32, i32
  }
}

</mosaic_0001>

<llo_original>
// kernel: packed_embedding_lookup.1
$region0: #{packed_embedding_lookup.1}
  #allocation0 [shape = 'u32[]', space=smem, size = 0x4, offset = 0x4, fixed_abs, tag = 'smem constant byte address 0x4 - core index']
  #allocation1 [shape = 'u32[72,128]{1,0:T(1,128)}', space=vmem, size = 0x9000, scoped, tag = 'internal scratch']
  %s0 = inlined_call_operand.vmem [shape: s32[2,4], index: 0, kind: input, shape index: {}]
  %s1 = inlined_call_operand.hbm [shape: f32[64,128], index: 1, kind: input, shape index: {}]
  %s2 = inlined_call_operand.vmem [shape: f32[2,128], index: 2, kind: output, shape index: {}]
  %s3 = sld [smem:[#allocation0]]
  $region22: #{packed_embedding_lookup.1} parent=0
    _
  %s5 = ssub.s32 1, %s3
  %s6 = scalar_select 0, %s5, %s3
  $region1: #{packed_embedding_lookup.1} parent=0
    #allocation2 [shape = 'u8[32768]{0}', space=vmem, size = 0x8000, scoped, tag = 'input window, operand 1, single buffered']
    #allocation3 [shape = 's32[1]{0}', space=sflag, size = 0x4, scoped, tag = 'scoped memory for packed_embedding_lookup.1']
    %7 = vsyncpa [#allocation3], 0
    // Predicated region
    $region2: #{packed_embedding_lookup.1} parent=1 // pred_check
      _
    $region3: #{packed_embedding_lookup.1} parent=1 // pred_check_branch
      %9 = sbr.rel (0) target = $region5
    $region4: #{packed_embedding_lookup.1} parent=1 // pred_region
      _
    $region5: #{packed_embedding_lookup.1} parent=1 // pred_fallthru
      _
    // Predicated region
    $region6: #{packed_embedding_lookup.1} parent=1 // pred_check
      _
    $region7: #{packed_embedding_lookup.1} parent=1 // pred_check_branch
      %11 = sbr.rel (0) target = $region9
    $region8: #{packed_embedding_lookup.1} parent=1 // pred_region
      %13 = vsyncadd [#allocation3], 0
      %s14 = sshll.u32 %s1, 4
      %s15 = int_to_ptr.hbm [resolvable:$true] %s14
      %s16 = sshll.u32 [#allocation2], 4
      %s17 = int_to_ptr.vmem [resolvable:$true] %s16
      %22 = dma.hbm_to_vmem [thread:$0]  %s15, 1024, %s17, [#allocation3], 128, 128, 8
    $region9: #{packed_embedding_lookup.1} parent=1 // pred_fallthru
      _
    // Predicated region
    $region10: #{packed_embedding_lookup.1} parent=1 // pred_check
      _
    $region11: #{packed_embedding_lookup.1} parent=1 // pred_check_branch
      %24 = sbr.rel (0) target = $region13
    $region12: #{packed_embedding_lookup.1} parent=1 // pred_region
      %26 = dma.done [#allocation3], 1024
    $region13: #{packed_embedding_lookup.1} parent=1 // pred_fallthru
      _
    %v27 = vld [vmem:[%s0] sm:$0x3]
    %vm28 = vcmp.ge.s32.totalorder %v27, 0
    %vm29 = vcmp.lt.s32.totalorder %v27, 16
    %vm30 = vmand %vm28, %vm29
    %v31 = vsel %vm30, %v27, 64
    %v32 = vlaneseq
    %v33 = vand.u32 %v32, 127
    %34 = vset.pattern.permute.xlu0 0
    %35 = vperm.xlu0 %34, %v31
    %v36 = vpop.permute.xlu0 %35
    %vm37 = vcmp.eq.s32.totalorder %v33, %v36
    %v38 = vsel %vm37, 1, 0
    %v39 = vcvt.s32.f32 %v38
    %v40 = vadd.f32 %v39, 0.0
    %v41 = vadd.s32 %v31, 16
    %42 = vset.pattern.permute.xlu0 1
    %43 = vperm.xlu0 %42, %v41
    %v44 = vpop.permute.xlu0 %43
    %vm45 = vcmp.eq.s32.totalorder %v33, %v44
    %v46 = vsel %vm45, 1, 0
    %v47 = vcvt.s32.f32 %v46
    %v48 = vadd.f32 %v40, %v47
    %v49 = vadd.s32 %v31, 32
    %50 = vset.pattern.permute.xlu0 2
    %51 = vperm.xlu0 %50, %v49
    %v52 = vpop.permute.xlu0 %51
    %vm53 = vcmp.eq.s32.totalorder %v33, %v52
    %v54 = vsel %vm53, 1, 0
    %v55 = vcvt.s32.f32 %v54
    %v56 = vadd.f32 %v48, %v55
    %v57 = vadd.s32 %v31, 48
    %58 = vset.pattern.permute.xlu0 3
    %59 = vperm.xlu0 %58, %v57
    %v60 = vpop.permute.xlu0 %59
    %vm61 = vcmp.eq.s32.totalorder %v33, %v60
    %v62 = vsel %vm61, 1, 0
    %v63 = vcvt.s32.f32 %v62
    %v64 = vadd.f32 %v56, %v63
    %v65 = vld [vmem:[#allocation2] sm:$0xff]
    %v66 = vld [vmem:[#allocation2 + $0x8] sm:$0xff]
    %v67 = vld [vmem:[#allocation2 + $0x10] sm:$0xff]
    %v68 = vld [vmem:[#allocation2 + $0x18] sm:$0xff]
    %v69 = vld [vmem:[#allocation2 + $0x20] sm:$0xff]
    %v70 = vld [vmem:[#allocation2 + $0x28] sm:$0xff]
    %v71 = vld [vmem:[#allocation2 + $0x30] sm:$0xff]
    %v72 = vld [vmem:[#allocation2 + $0x38] sm:$0xff]
    %vm73 = vcmask 523264
    %v75 = vsel %vm73, %v64, 0
    %77 = vmatpush.msra.mxu0 0.0
    %78 = vmatpush.msra.mxu0 0.0
    %79 = vmatpush.msra.mxu0 0.0
    %80 = vmatpush.msra.mxu0 0.0
    %81 = vmatpush.msra.mxu0 0.0
    %82 = vmatpush.msra.mxu0 0.0
    %83 = vmatpush.msra.mxu0 0.0
    %84 = vmatpush.msra.mxu0 0.0
    %85 = vmatpush.msra.mxu0 %v72
    %86 = vmatpush.msra.mxu0 %v71
    %87 = vmatpush.msra.mxu0 %v70
    %88 = vmatpush.msra.mxu0 %v69
    %89 = vmatpush.msra.mxu0 %v68
    %90 = vmatpush.msra.mxu0 %v67
    %91 = vmatpush.msra.mxu0 %v66
    %92 = vmatpush.msra.mxu0 %v65
    %93 = vmatmul.f32.gmra.mxu0 %v75
    %v94 = vpop.f32.mrf.mxu0
    %v95 = vadd.f32 0.0, %v94
    %96 = vdwg.mxu0
    %97 = vst [vmem:[%s2] sm:$0x3] %v95
    // Predicated region
    $region14: #{packed_embedding_lookup.1} parent=1 // pred_check
      _
    $region15: #{packed_embedding_lookup.1} parent=1 // pred_check_branch
      %99 = sbr.rel (0) target = $region17
    $region16: #{packed_embedding_lookup.1} parent=1 // pred_region
      _
    $region17: #{packed_embedding_lookup.1} parent=1 // pred_fallthru
      _
    // Predicated region
    $region18: #{packed_embedding_lookup.1} parent=1 // pred_check
      _
    $region19: #{packed_embedding_lookup.1} parent=1 // pred_check_branch
      %101 = sbr.rel (0) target = $region21
    $region20: #{packed_embedding_lookup.1} parent=1 // pred_region
      _
    $region21: #{packed_embedding_lookup.1} parent=1 // pred_fallthru
      _
    %102 = vsyncpa [#allocation3], 1

</llo_original>
